<compile_context>
chip_gen: v5e
topology: v5e:2x2
jax: 0.10.0
libtpu: 0.0.40
codegen_flags: <defaults>
</compile_context>

<pallas_src>
import functools

import jax
import jax.numpy as jnp
from jax import lax
from jax.experimental import pallas as pl
from jax.experimental.pallas import tpu as pltpu


def _lse_kernel(logits_ref, out_ref, m_sc, l_sc, *, rem):
    """One (row-tile, class-chunk) step of streaming per-row logsumexp.

    logits_ref: (TILE_N, TILE_C) input dtype (cast to f32 per-tile in-kernel)
    out_ref:    (TILE_N, 1) f32 per-row logsumexp (written at last chunk only)
    m_sc/l_sc:  (TILE_N, 1) f32 running max / running sum-exp
    rem:        static count of valid lanes in the last class chunk
                (0 means every chunk is full -> no masking anywhere).
    """
    j = pl.program_id(1)
    last = pl.num_programs(1) - 1

    @pl.when(j == 0)
    def _init():
        m_sc[...] = jnp.full_like(m_sc, -jnp.inf)
        l_sc[...] = jnp.zeros_like(l_sc)

    # Cast per-tile (keeps HBM traffic at the input dtype width, e.g. bf16).
    x = logits_ref[...].astype(jnp.float32)            # (TILE_N, TILE_C)

    def update(x_tile):
        m_prev = m_sc[...]
        m_new = jnp.maximum(m_prev, jnp.max(x_tile, axis=-1, keepdims=True))
        # alpha = exp(-inf - m_new) = 0 on the first chunk.
        l_sc[...] = (jnp.exp(m_prev - m_new) * l_sc[...]
                     + jnp.sum(jnp.exp(x_tile - m_new), axis=-1, keepdims=True))
        m_sc[...] = m_new

    if rem == 0:
        # Every chunk covers exactly tile_c valid classes: no masking at all.
        update(x)
    else:
        # Interior chunks: raw tile, zero masking overhead.
        @pl.when(j != last)
        def _steady():
            update(x)

        # Last chunk only: mask the (statically known) padded lanes with -inf.
        @pl.when(j == last)
        def _tail():
            col = lax.broadcasted_iota(jnp.int32, x.shape, 1)
            update(jnp.where(col < rem, x, -jnp.inf))

    @pl.when(j == last)
    def _finalize():
        out_ref[...] = m_sc[...] + jnp.log(l_sc[...])


def cross_entropy(logits: jax.Array, labels: jax.Array,
                  *, tile_n: int | None = None,
                  tile_c: int | None = None) -> jax.Array:
    """logits: (N, C) float (f32 or bf16), labels: (N,) int class indices.

    Returns scalar f32 mean cross-entropy loss (== nn.CrossEntropyLoss()).
    """
    N, C = logits.shape
    itemsize = jnp.dtype(logits.dtype).itemsize

    # ---- class-axis chunking --------------------------------------------
    # Prefer one long lane-dense chunk: full C for moderate vocab, else a
    # 4096-lane chunk (long contiguous DMA runs, few online-update passes,
    # bounded f32-temporary footprint).
    if tile_c is None:
        tile_c = C if C <= 4096 else 4096
    tile_c = min(tile_c, C)
    if tile_c != C:
        tile_c = max(128, (tile_c // 128) * 128)
    num_c_tiles = pl.cdiv(C, tile_c)
    rem = C % tile_c                        # valid lanes in last chunk (0 = full)

    # ---- row tiling -------------------------------------------------------
    n_pad8 = ((N + 7) // 8) * 8
    if tile_n is None:
        tile_n = 256                        # keep (TILE_N,1) column vectors small
    tile_n = max(8, (tile_n // 8) * 8)
    tile_n = min(tile_n, n_pad8)
    # Guarantee >= 2 row tiles whenever there are enough rows, so the
    # "parallel" row axis can be sharded across v7x's two TensorCores.
    if n_pad8 >= 16:
        tile_n = min(tile_n, max(8, ((n_pad8 // 2) // 8) * 8))
    n_pad = ((N + tile_n - 1) // tile_n) * tile_n

    logits_p = logits
    if n_pad != N:
        # Padded rows get zero logits; their (finite) lse is dropped below.
        logits_p = jnp.pad(logits, ((0, n_pad - N), (0, 0)))

    # ---- explicit VMEM budget ---------------------------------------------
    # 2x double-buffered input block + ~4 f32 (TILE_N, TILE_C) temporaries
    # (cast, x - m, exp, mask) + small column scratch; 2x margin, capped at
    # 48 MiB (inside v7x's 64 MiB physical, above v5e's 16 MiB scoped default).
    in_block_bytes = tile_n * tile_c * itemsize
    f32_block_bytes = tile_n * tile_c * 4
    est_vmem = 2 * in_block_bytes + 4 * f32_block_bytes + 16 * tile_n * 4
    vmem_limit = int(min(48 * 1024 * 1024, max(32 * 1024 * 1024, 2 * est_vmem)))

    grid = (n_pad // tile_n, num_c_tiles)
    kernel = functools.partial(_lse_kernel, rem=rem)

    lse = pl.pallas_call(
        kernel,
        out_shape=jax.ShapeDtypeStruct((n_pad, 1), jnp.float32),
        grid_spec=pltpu.PrefetchScalarGridSpec(
            num_scalar_prefetch=0,
            grid=grid,
            in_specs=[
                pl.BlockSpec((tile_n, tile_c), lambda i, j: (i, j)),
            ],
            out_specs=pl.BlockSpec((tile_n, 1), lambda i, j: (i, 0)),
            scratch_shapes=[
                pltpu.VMEM((tile_n, 1), jnp.float32),   # running max  m
                pltpu.VMEM((tile_n, 1), jnp.float32),   # running sum  l
            ],
        ),
        compiler_params=pltpu.CompilerParams(
            dimension_semantics=("parallel", "arbitrary"),
            vmem_limit_bytes=vmem_limit,
        ),
        cost_estimate=pl.CostEstimate(
            flops=3 * N * C,
            transcendentals=N * C,
            bytes_accessed=N * C * itemsize + N * 4,
        ),
    )(logits_p)

    # Picked logit gathered in the wrapper (tiny HBM gather, keeps the kernel
    # free of per-element compare/select work), then masked sum + one divide.
    labels_i32 = labels.astype(jnp.int32)
    picked = jnp.take_along_axis(logits, labels_i32[:, None], axis=1)
    picked = picked[:, 0].astype(jnp.float32)
    per_example = lse[:N, 0] - picked
    return jnp.sum(per_example) / N


if __name__ == "__main__":
    key = jax.random.PRNGKey(0)
    k_logits, k_labels, k_logits2, k_labels2 = jax.random.split(key, 4)

    # --- primary small case (f32, single class chunk) ---------------------
    N, C = 8, 32
    logits = jax.random.normal(k_logits, (N, C), dtype=jnp.float32)
    labels = jax.random.randint(k_labels, (N,), 0, C, dtype=jnp.int32)

    loss = cross_entropy(logits, labels)
    jax.block_until_ready(loss)

    ref = jnp.mean(
        jax.nn.logsumexp(logits, axis=-1) - logits[jnp.arange(N), labels]
    )
    assert jnp.allclose(loss, ref, atol=1e-5, rtol=1e-5), (loss, ref)

    # --- secondary check: bf16 input, ragged N, chunked/ragged C ----------
    N2, C2 = 12, 200
    logits2 = jax.random.normal(k_logits2, (N2, C2), dtype=jnp.bfloat16)
    labels2 = jax.random.randint(k_labels2, (N2,), 0, C2, dtype=jnp.int32)

    loss2 = cross_entropy(logits2, labels2, tile_c=128)
    jax.block_until_ready(loss2)

    l2f = logits2.astype(jnp.float32)
    ref2 = jnp.mean(
        jax.nn.logsumexp(l2f, axis=-1) - l2f[jnp.arange(N2), labels2]
    )
    assert jnp.allclose(loss2, ref2, atol=1e-4, rtol=1e-4), (loss2, ref2)

    print("KERNEL_OK")
</pallas_src>

<mosaic_0001>
module attributes {stable_mosaic.version = 11 : i64} {
  func.func @_lse_kernel(%arg0: i32, %arg1: i32, %arg2: memref<8x32xf32, #tpu.memory_space<vmem>>, %arg3: memref<8x1xf32, #tpu.memory_space<vmem>>, %arg4: memref<8x1xf32, #tpu.memory_space<vmem>>, %arg5: memref<8x1xf32, #tpu.memory_space<vmem>>) attributes {dimension_semantics = [#tpu.dimension_semantics<parallel>, #tpu.dimension_semantics<arbitrary>], iteration_bounds = array<i64: 1, 1>, scalar_prefetch = 0 : i64, scratch_operands = 2 : i64, tpu.core_type = #tpu.core_type<tc>, window_params = [{transform_indices = @transform_0, window_bounds = array<i64: 8, 32>}, {transform_indices = @transform_1, window_bounds = array<i64: 8, 1>}]} {
    %c0_i32 = arith.constant 0 : i32
    %0 = arith.cmpi eq, %arg1, %c0_i32 : i32
    %1 = arith.extui %0 : i1 to i32
    %c0_i32_0 = arith.constant 0 : i32
    %2 = arith.cmpi ne, %1, %c0_i32_0 : i32
    scf.if %2 {
      %cst_13 = arith.constant 0xFF800000 : f32
      %23 = vector.broadcast %cst_13 : f32 to vector<8x1xf32>
      %c0_14 = arith.constant 0 : index
      %c0_15 = arith.constant 0 : index
      %24 = vector.load %arg4[%c0_14, %c0_15] : memref<8x1xf32, #tpu.memory_space<vmem>>, vector<8x1xf32>
      tpu.vector_store %arg4[%c0_14, %c0_15], %23 {strides = array<i32>} : memref<8x1xf32, #tpu.memory_space<vmem>>, vector<8x1xf32>,
      %cst_16 = arith.constant 0.000000e+00 : f32
      %25 = vector.broadcast %cst_16 : f32 to vector<8x1xf32>
      %c0_17 = arith.constant 0 : index
      %c0_18 = arith.constant 0 : index
      %26 = vector.load %arg5[%c0_17, %c0_18] : memref<8x1xf32, #tpu.memory_space<vmem>>, vector<8x1xf32>
      tpu.vector_store %arg5[%c0_17, %c0_18], %25 {strides = array<i32>} : memref<8x1xf32, #tpu.memory_space<vmem>>, vector<8x1xf32>,
    } else {
    }
    %c0 = arith.constant 0 : index
    %c0_1 = arith.constant 0 : index
    %3 = vector.load %arg2[%c0, %c0_1] : memref<8x32xf32, #tpu.memory_space<vmem>>, vector<8x32xf32>
    %c0_2 = arith.constant 0 : index
    %c0_3 = arith.constant 0 : index
    %4 = vector.load %arg4[%c0_2, %c0_3] : memref<8x1xf32, #tpu.memory_space<vmem>>, vector<8x1xf32>
    %cst = arith.constant dense<0xFF800000> : vector<8xf32>
    %5 = vector.multi_reduction <maximumf>, %3, %cst [1] : vector<8x32xf32> to vector<8xf32>
    %6 = vector.shape_cast %5 : vector<8xf32> to vector<8x1xf32>
    %7 = arith.maximumf %4, %6 : vector<8x1xf32>
    %8 = arith.subf %4, %7 : vector<8x1xf32>
    %9 = math.exp %8 : vector<8x1xf32>
    %c0_4 = arith.constant 0 : index
    %c0_5 = arith.constant 0 : index
    %10 = vector.load %arg5[%c0_4, %c0_5] : memref<8x1xf32, #tpu.memory_space<vmem>>, vector<8x1xf32>
    %11 = arith.mulf %9, %10 : vector<8x1xf32>
    %12 = vector.broadcast %7 : vector<8x1xf32> to vector<8x32xf32>
    %13 = arith.subf %3, %12 : vector<8x32xf32>
    %14 = math.exp %13 : vector<8x32xf32>
    %cst_6 = arith.constant dense<0.000000e+00> : vector<8xf32>
    %15 = vector.multi_reduction <add>, %14, %cst_6 [1] : vector<8x32xf32> to vector<8xf32>
    %16 = vector.shape_cast %15 : vector<8xf32> to vector<8x1xf32>
    %17 = arith.addf %11, %16 : vector<8x1xf32>
    %c0_7 = arith.constant 0 : index
    %c0_8 = arith.constant 0 : index
    %18 = vector.load %arg5[%c0_7, %c0_8] : memref<8x1xf32, #tpu.memory_space<vmem>>, vector<8x1xf32>
    tpu.vector_store %arg5[%c0_7, %c0_8], %17 {strides = array<i32>} : memref<8x1xf32, #tpu.memory_space<vmem>>, vector<8x1xf32>,
    %c0_9 = arith.constant 0 : index
    %c0_10 = arith.constant 0 : index
    %19 = vector.load %arg4[%c0_9, %c0_10] : memref<8x1xf32, #tpu.memory_space<vmem>>, vector<8x1xf32>
    tpu.vector_store %arg4[%c0_9, %c0_10], %7 {strides = array<i32>} : memref<8x1xf32, #tpu.memory_space<vmem>>, vector<8x1xf32>,
    %c0_i32_11 = arith.constant 0 : i32
    %20 = arith.cmpi eq, %arg1, %c0_i32_11 : i32
    %21 = arith.extui %20 : i1 to i32
    %c0_i32_12 = arith.constant 0 : i32
    %22 = arith.cmpi ne, %21, %c0_i32_12 : i32
    scf.if %22 {
      %c0_13 = arith.constant 0 : index
      %c0_14 = arith.constant 0 : index
      %23 = vector.load %arg4[%c0_13, %c0_14] : memref<8x1xf32, #tpu.memory_space<vmem>>, vector<8x1xf32>
      %c0_15 = arith.constant 0 : index
      %c0_16 = arith.constant 0 : index
      %24 = vector.load %arg5[%c0_15, %c0_16] : memref<8x1xf32, #tpu.memory_space<vmem>>, vector<8x1xf32>
      %25 = math.log %24 : vector<8x1xf32>
      %26 = arith.addf %23, %25 : vector<8x1xf32>
      %c0_17 = arith.constant 0 : index
      %c0_18 = arith.constant 0 : index
      %27 = vector.load %arg3[%c0_17, %c0_18] : memref<8x1xf32, #tpu.memory_space<vmem>>, vector<8x1xf32>
      tpu.vector_store %arg3[%c0_17, %c0_18], %26 {strides = array<i32>} : memref<8x1xf32, #tpu.memory_space<vmem>>, vector<8x1xf32>,
    } else {
    }
    return
  }
  func.func @transform_0(%arg0: i32, %arg1: i32) -> (i32, i32) {
    %c0_i32 = arith.constant 0 : i32
    return %arg0, %arg1 : i32, i32
  }
  func.func @transform_1(%arg0: i32, %arg1: i32) -> (i32, i32) {
    %c0_i32 = arith.constant 0 : i32
    %c0_i32_0 = arith.constant 0 : i32
    return %arg0, %c0_i32 : i32, i32
  }
}

</mosaic_0001>

<llo_original>
// kernel: tpu_custom_call.1
$region0: #{tpu_custom_call.1}
  #allocation0 [shape = 'u32[]', space=smem, size = 0x4, offset = 0x4, fixed_abs, tag = 'smem constant byte address 0x4 - core index']
  #allocation1 [shape = 'u32[72,128]{1,0:T(1,128)}', space=vmem, size = 0x9000, scoped, tag = 'internal scratch']
  #allocation2 [shape = 'f32[8,1]{1,0:T(8,128)}', space=vmem, size = 0x1000, scoped, tag = 'scratch operand']
  #allocation3 [shape = 'f32[8,1]{1,0:T(8,128)}', space=vmem, size = 0x1000, scoped, tag = 'scratch operand']
  %s0 = inlined_call_operand.hbm [shape: f32[8,32], index: 0, kind: input, shape index: {}]
  %s1 = inlined_call_operand.vmem [shape: f32[8,1], index: 1, kind: output, shape index: {}]
  %s2 = sld [smem:[#allocation0]]
  $region26: #{tpu_custom_call.1} parent=0
    _
  %s4 = ssub.s32 1, %s2
  %s5 = scalar_select 0, %s4, %s2
  $region1: #{tpu_custom_call.1} parent=0
    #allocation4 [shape = 'u8[4096]{0}', space=vmem, size = 0x1000, scoped, tag = 'input window, operand 0, single buffered']
    #allocation5 [shape = 's32[1]{0}', space=sflag, size = 0x4, scoped, tag = 'scoped memory for tpu_custom_call.1']
    %6 = vsyncpa [#allocation5], 0
    // Predicated region
    $region2: #{tpu_custom_call.1} parent=1 // pred_check
      _
    $region3: #{tpu_custom_call.1} parent=1 // pred_check_branch
      %8 = sbr.rel (0) target = $region5
    $region4: #{tpu_custom_call.1} parent=1 // pred_region
      %10 = vsyncadd [#allocation5], 0
      %s12 = sshll.u32 %s0, 4
      %s13 = int_to_ptr.hbm [resolvable:$true] %s12
      %s14 = sshll.u32 [#allocation4], 4
      %s15 = int_to_ptr.vmem [resolvable:$true] %s14
      %17 = dma.hbm_to_vmem [thread:$0]  %s13, 128, %s15, [#allocation5]
    $region5: #{tpu_custom_call.1} parent=1 // pred_fallthru
      _
    // Predicated region
    $region6: #{tpu_custom_call.1} parent=1 // pred_check
      _
    $region7: #{tpu_custom_call.1} parent=1 // pred_check_branch
      %19 = sbr.rel (0) target = $region9
    $region8: #{tpu_custom_call.1} parent=1 // pred_region
      %21 = dma.done [#allocation5], 128
    $region9: #{tpu_custom_call.1} parent=1 // pred_fallthru
      _
    %p22 = scmp.eq.s32.totalorder 0, 0
    // Predicated region
    $region10: #{tpu_custom_call.1} parent=1 // pred_check
      %p23 = pneg %p22
    $region11: #{tpu_custom_call.1} parent=1 // pred_check_branch
      %25 = sbr.rel (%p23) target = $region13
    $region12: #{tpu_custom_call.1} parent=1 // pred_region
      %vm26 = vcmask 7168
      %27 = vst.msk [vmem:[#allocation2] sm:$0xff] %vm26, -inf
      %28 = vst.msk [vmem:[#allocation3] sm:$0xff] %vm26, 0.0
    $region13: #{tpu_custom_call.1} parent=1 // pred_fallthru
      _
    %v29 = vld [vmem:[#allocation4] sm:$0xff]
    %v30 = vld [vmem:[#allocation2] sm:$0xff]
    %vm31 = vcmask 261120
    %v32 = vsel %vm31, %v29, -inf
    %33 = vmax.xlane.f32.xlu0 %v32
    %v34 = vpop.xlane.xlu0 %33
    %v35 = vmax.f32 %v30, %v34
    %v36 = vsub.f32 %v30, %v35
    %v37 = vmul.f32 %v36, 1.442695
    %v38 = vpow.pop %v37
    %v39 = vld [vmem:[#allocation3] sm:$0xff]
    %v40 = vmul.f32 %v38, %v39
    %42 = vset.pattern.permute.xlu0 0
    %43 = vperm.xlu0 %42, %v35
    %v44 = vpop.permute.xlu0 %43
    %v46 = vsub.f32 %v29, %v44
    %v47 = vmul.f32 %v46, 1.442695
    %v48 = vpow.pop %v47
    %v49 = vsel %vm31, %v48, 0.0
    %50 = vadd.xlane.f32.xlu0 %v49
    %v51 = vpop.xlane.xlu0 %50
    %v52 = vadd.f32 %v40, %v51
    %vm53 = vcmask 7168
    %54 = vst.msk [vmem:[#allocation3] sm:$0xff] %vm53, %v52
    %55 = vst.msk [vmem:[#allocation2] sm:$0xff] %vm53, %v35
    // Predicated region
    $region14: #{tpu_custom_call.1} parent=1 // pred_check
      %p56 = pneg %p22
    $region15: #{tpu_custom_call.1} parent=1 // pred_check_branch
      %58 = sbr.rel (%p56) target = $region17
    $region16: #{tpu_custom_call.1} parent=1 // pred_region
      %v59 = vld [vmem:[#allocation2] sm:$0xff]
      %v60 = vld [vmem:[#allocation3] sm:$0xff]
      %v61 = vlog2.pop %v60
      %v62 = vmul.f32 %v61, 0.6931472
      %v63 = vadd.f32 %v59, %v62
      %64 = vst.msk [vmem:[%s1] sm:$0xff] %vm53, %v63
    $region17: #{tpu_custom_call.1} parent=1 // pred_fallthru
      _
    // Predicated region
    $region18: #{tpu_custom_call.1} parent=1 // pred_check
      _
    $region19: #{tpu_custom_call.1} parent=1 // pred_check_branch
      %66 = sbr.rel (0) target = $region21
    $region20: #{tpu_custom_call.1} parent=1 // pred_region
      _
    $region21: #{tpu_custom_call.1} parent=1 // pred_fallthru
      _
    // Predicated region
    $region22: #{tpu_custom_call.1} parent=1 // pred_check
      _
    $region23: #{tpu_custom_call.1} parent=1 // pred_check_branch
      %68 = sbr.rel (0) target = $region25
    $region24: #{tpu_custom_call.1} parent=1 // pred_region
      _
    $region25: #{tpu_custom_call.1} parent=1 // pred_fallthru
      _
    %69 = vsyncpa [#allocation5], 1

</llo_original>
